<compile_context>
chip_gen: v7x
topology: tpu7x:2x2x1
jax: 0.10.0
libtpu: 0.0.40
codegen_flags: <defaults>
</compile_context>

<pallas_src>
import functools
import math

import jax
import jax.numpy as jnp
from jax.experimental import pallas as pl
from jax.experimental.pallas import tpu as pltpu


# ----------------------------- budgets / tiling -----------------------------

def _vmem_limit_bytes():
    """~75% of this generation's VMEM (48 MiB on v7x, 96 MiB on v5e/v6e)."""
    try:
        cap = getattr(pltpu.get_tpu_info(), "vmem_capacity_bytes", None)
        if cap:
            return int(cap * 0.75)
    except Exception:
        pass
    return 64 * 1024 * 1024


_VMEM_LIMIT = _vmem_limit_bytes()


def _pick_tile(dim, target, align):
    """Largest multiple of `align` <= target that divides `dim`; else full dim.

    Full-dim blocks are always legal; aligned divisors keep the (8,128) layout
    constraint satisfied for tiled dims.
    """
    if dim <= target:
        return dim
    best = None
    t = align
    while t <= target:
        if dim % t == 0:
            best = t
        t += align
    return best if best is not None else dim


# ----------------------------- Pallas kernels -------------------------------

def _activation_epilogue(y, activation):
    if activation == "gelu":
        # TODO(synk): HF BERT default "gelu" is the exact erf form; tanh
        # approximation used here for robust Mosaic lowering.
        c = math.sqrt(2.0 / math.pi)
        y = 0.5 * y * (1.0 + jnp.tanh(c * (y + 0.044715 * y * y * y)))
    elif activation == "tanh":
        y = jnp.tanh(y)
    return y


def _linear_kernel(x_ref, w_ref, b_ref, o_ref, acc_ref, *, activation):
    k = pl.program_id(2)

    @pl.when(k == 0)
    def _():
        acc_ref[...] = jnp.zeros_like(acc_ref)

    acc_ref[...] += jnp.dot(
        x_ref[...].astype(jnp.bfloat16),          # no-op cast: activations are bf16
        w_ref[...].astype(jnp.bfloat16),
        preferred_element_type=jnp.float32)

    @pl.when(k == pl.num_programs(2) - 1)
    def _():
        # Bias + activation applied once, in fp32, at finalize.
        y = acc_ref[...] + b_ref[...].astype(jnp.float32)
        o_ref[...] = _activation_epilogue(y, activation).astype(o_ref.dtype)


def linear(x, w, b, activation="none", *, tm=1024, tn=1536, tk=1024):
    """y = act(x @ w + b); bf16 operands / outputs, fp32 MXU accumulation."""
    m, kdim = x.shape
    n = w.shape[1]
    tm = _pick_tile(m, tm, 8)
    tn = _pick_tile(n, tn, 128)
    tk = _pick_tile(kdim, tk, 128)
    grid = (m // tm, n // tn, kdim // tk)
    return pl.pallas_call(
        functools.partial(_linear_kernel, activation=activation),
        out_shape=jax.ShapeDtypeStruct((m, n), jnp.bfloat16),
        grid_spec=pltpu.PrefetchScalarGridSpec(
            num_scalar_prefetch=0,
            grid=grid,
            in_specs=[
                pl.BlockSpec((tm, tk), lambda i, j, k: (i, k)),
                pl.BlockSpec((tk, tn), lambda i, j, k: (k, j)),
                pl.BlockSpec((1, tn), lambda i, j, k: (0, j)),
            ],
            out_specs=pl.BlockSpec((tm, tn), lambda i, j, k: (i, j)),
            scratch_shapes=[pltpu.VMEM((tm, tn), jnp.float32)],
        ),
        compiler_params=pltpu.CompilerParams(
            dimension_semantics=("parallel", "parallel", "arbitrary"),
            vmem_limit_bytes=_VMEM_LIMIT),
    )(x, w, b.reshape(1, n))


def _linear_res_ln_kernel(x_ref, w_ref, b_ref, r_ref, g_ref, bt_ref,
                          o_ref, acc_ref, *, eps):
    k = pl.program_id(1)

    @pl.when(k == 0)
    def _():
        acc_ref[...] = jnp.zeros_like(acc_ref)

    acc_ref[...] += jnp.dot(
        x_ref[...].astype(jnp.bfloat16),
        w_ref[...].astype(jnp.bfloat16),
        preferred_element_type=jnp.float32)

    @pl.when(k == pl.num_programs(1) - 1)
    def _():
        # Fused epilogue: bias + residual + layernorm, fp32, one store per tile.
        y = (acc_ref[...] + b_ref[...].astype(jnp.float32)
             + r_ref[...].astype(jnp.float32))
        mean = jnp.mean(y, axis=-1, keepdims=True)
        var = jnp.mean(jnp.square(y - mean), axis=-1, keepdims=True)
        y = (y - mean) * jax.lax.rsqrt(var + eps)
        o_ref[...] = (y * g_ref[...] + bt_ref[...]).astype(o_ref.dtype)


def linear_residual_layernorm(x, w, b, residual, gamma, beta,
                              eps=1e-12, *, tm=1024, tk=1024):
    """layernorm(x @ w + b + residual) with the LN fused into the matmul epilogue.

    N is kept un-tiled (full output width) so the row-wise LN sees the whole row.
    """
    m, kdim = x.shape
    n = w.shape[1]
    tm = _pick_tile(m, tm, 8)
    tk = _pick_tile(kdim, tk, 128)
    grid = (m // tm, kdim // tk)
    return pl.pallas_call(
        functools.partial(_linear_res_ln_kernel, eps=eps),
        out_shape=jax.ShapeDtypeStruct((m, n), jnp.bfloat16),
        grid_spec=pltpu.PrefetchScalarGridSpec(
            num_scalar_prefetch=0,
            grid=grid,
            in_specs=[
                pl.BlockSpec((tm, tk), lambda i, k: (i, k)),
                pl.BlockSpec((tk, n), lambda i, k: (k, 0)),
                pl.BlockSpec((1, n), lambda i, k: (0, 0)),
                pl.BlockSpec((tm, n), lambda i, k: (i, 0)),
                pl.BlockSpec((1, n), lambda i, k: (0, 0)),
                pl.BlockSpec((1, n), lambda i, k: (0, 0)),
            ],
            out_specs=pl.BlockSpec((tm, n), lambda i, k: (i, 0)),
            scratch_shapes=[pltpu.VMEM((tm, n), jnp.float32)],
        ),
        compiler_params=pltpu.CompilerParams(
            dimension_semantics=("parallel", "arbitrary"),
            vmem_limit_bytes=_VMEM_LIMIT),
    )(x, w, b.reshape(1, n), residual, gamma.reshape(1, n), beta.reshape(1, n))


def _embed_ln_kernel(w_ref, p_ref, t_ref, g_ref, b_ref, o_ref, *, eps):
    # Fused embedding add (word + position + token-type) + LayerNorm.
    x = (w_ref[0].astype(jnp.float32)
         + p_ref[...].astype(jnp.float32)
         + t_ref[...].astype(jnp.float32))
    mean = jnp.mean(x, axis=-1, keepdims=True)
    var = jnp.mean(jnp.square(x - mean), axis=-1, keepdims=True)
    y = (x - mean) * jax.lax.rsqrt(var + eps)
    o_ref[0] = (y * g_ref[...] + b_ref[...]).astype(o_ref.dtype)


def embed_layernorm(word, pos, typ, gamma, beta, eps=1e-12):
    """word: (B,S,H); pos: (S,H); typ: (1,H). Returns bf16 (B,S,H)."""
    b, s, h = word.shape
    return pl.pallas_call(
        functools.partial(_embed_ln_kernel, eps=eps),
        out_shape=jax.ShapeDtypeStruct((b, s, h), jnp.bfloat16),
        grid=(b,),
        in_specs=[pl.BlockSpec((1, s, h), lambda i: (i, 0, 0)),
                  pl.BlockSpec((s, h), lambda i: (0, 0)),
                  pl.BlockSpec((1, h), lambda i: (0, 0)),
                  pl.BlockSpec((1, h), lambda i: (0, 0)),
                  pl.BlockSpec((1, h), lambda i: (0, 0))],
        out_specs=pl.BlockSpec((1, s, h), lambda i: (i, 0, 0)),
        compiler_params=pltpu.CompilerParams(
            dimension_semantics=("parallel",),
            vmem_limit_bytes=_VMEM_LIMIT),
    )(word, pos, typ, gamma.reshape(1, h), beta.reshape(1, h))


def _attention_kernel(qkv_ref, m_ref, o_ref, kt_ref, ctx_ref, *, nh, dh, scale):
    # qkv_ref block: (1, S, 3H) bf16 fused projections; head bands sliced from
    # the ref so only one head's operands are live at a time.
    hdim = nh * dh
    mask = m_ref[0]                                    # (1, S) fp32 additive
    # Materialize K^T once per block (one XLU transpose instead of nh).
    kt_ref[...] = qkv_ref[0, :, hdim:2 * hdim].astype(jnp.float32).T   # (H, S)
    for h in range(nh):                                # static unroll over heads
        qh = qkv_ref[0, :, h * dh:(h + 1) * dh].astype(jnp.bfloat16)
        kth = kt_ref[h * dh:(h + 1) * dh, :].astype(jnp.bfloat16)
        vh = qkv_ref[0, :, 2 * hdim + h * dh:
                     2 * hdim + (h + 1) * dh].astype(jnp.bfloat16)
        # scores = q @ k^T, fp32 accumulation; mask/softmax in fp32.
        s = jnp.dot(qh, kth, preferred_element_type=jnp.float32) * scale  # (S, S)
        s = s + mask
        s = s - jnp.max(s, axis=-1, keepdims=True)
        p = jnp.exp(s)
        p = p * pl.reciprocal(jnp.sum(p, axis=-1, keepdims=True), approx=True)
        # Per-head write into VMEM scratch keeps live vregs to ~one head.
        ctx_ref[:, h * dh:(h + 1) * dh] = jnp.dot(
            p.astype(jnp.bfloat16), vh, preferred_element_type=jnp.float32)
    # One lane-dense (S, H) store.
    o_ref[0] = ctx_ref[...].astype(o_ref.dtype)
    # TODO(synk): for S >= ~1024 (esp. v7x 64 MiB VMEM) switch to a flash-style
    # online-softmax with a KV-tile grid axis and a query-tile parallel axis
    # instead of materializing the full (S, S) score block per head.


def attention(qkv, add_mask, nh, dh, scale):
    """qkv: (B, S, 3H) bf16 fused projections; add_mask: (B, 1, S) fp32 additive."""
    b, s, three_h = qkv.shape
    hdim = three_h // 3
    return pl.pallas_call(
        functools.partial(_attention_kernel, nh=nh, dh=dh, scale=scale),
        out_shape=jax.ShapeDtypeStruct((b, s, hdim), jnp.bfloat16),
        grid=(b,),
        in_specs=[pl.BlockSpec((1, s, three_h), lambda i: (i, 0, 0)),
                  pl.BlockSpec((1, 1, s), lambda i: (i, 0, 0))],
        out_specs=pl.BlockSpec((1, s, hdim), lambda i: (i, 0, 0)),
        scratch_shapes=[pltpu.VMEM((hdim, s), jnp.float32),   # K^T
                        pltpu.VMEM((s, hdim), jnp.float32)],  # per-head context
        compiler_params=pltpu.CompilerParams(
            dimension_semantics=("parallel",),
            vmem_limit_bytes=_VMEM_LIMIT),
    )(qkv, add_mask)


def _pool_cls_kernel(x_ref, pw_ref, pb_ref, cw_ref, cb_ref, o_ref):
    # Fused BERT pooler (tanh(cls @ Wp + bp)) + classifier head, one launch.
    x = x_ref[...].astype(jnp.bfloat16)
    pooled = jnp.tanh(
        jnp.dot(x, pw_ref[...].astype(jnp.bfloat16),
                preferred_element_type=jnp.float32)
        + pb_ref[...].astype(jnp.float32))
    logits = (jnp.dot(pooled.astype(jnp.bfloat16),
                      cw_ref[...].astype(jnp.bfloat16),
                      preferred_element_type=jnp.float32)
              + cb_ref[...].astype(jnp.float32))
    o_ref[...] = logits


def pooler_classifier(cls_tok, pool_w, pool_b, cls_w, cls_b):
    b, h = cls_tok.shape
    c = cls_w.shape[1]
    return pl.pallas_call(
        _pool_cls_kernel,
        out_shape=jax.ShapeDtypeStruct((b, c), jnp.float32),
        compiler_params=pltpu.CompilerParams(vmem_limit_bytes=_VMEM_LIMIT),
    )(cls_tok, pool_w, pool_b.reshape(1, h), cls_w, cls_b.reshape(1, c))


# ----------------------------- Parameter init -------------------------------

def _normal(key, shape, std=0.02, dtype=jnp.float32):
    return (std * jax.random.normal(key, shape, dtype=jnp.float32)).astype(dtype)


def init_params(key, cfg):
    H, I = cfg["hidden"], cfg["intermediate"]
    keys = iter(jax.random.split(key, 128))
    wdt = jnp.bfloat16  # matmul weights stored bf16 (MXU-native, half HBM bytes)
    params = {
        "word_emb": _normal(next(keys), (cfg["vocab"], H)),
        "pos_emb": _normal(next(keys), (cfg["max_pos"], H)),
        "type_emb": _normal(next(keys), (cfg["type_vocab"], H)),
        "emb_ln_g": jnp.ones((H,), jnp.float32),
        "emb_ln_b": jnp.zeros((H,), jnp.float32),
        "layers": [],
        "pool_w": _normal(next(keys), (H, H), dtype=wdt),
        "pool_b": jnp.zeros((H,), jnp.float32),
        "cls_w": _normal(next(keys), (H, cfg["classes"]), dtype=wdt),
        "cls_b": jnp.zeros((cfg["classes"],), jnp.float32),
    }
    for _ in range(cfg["layers"]):
        # Q, K, V projections fused into one [H, 3H] weight.
        qkv_w = jnp.concatenate(
            [_normal(next(keys), (H, H)) for _ in range(3)], axis=1).astype(wdt)
        layer = {
            "qkv_w": qkv_w,
            "qkv_b": jnp.zeros((3 * H,), jnp.float32),
            "ao_w": _normal(next(keys), (H, H), dtype=wdt),
            "ao_b": jnp.zeros((H,), jnp.float32),
            "ln1_g": jnp.ones((H,), jnp.float32), "ln1_b": jnp.zeros((H,), jnp.float32),
            "i_w": _normal(next(keys), (H, I), dtype=wdt),
            "i_b": jnp.zeros((I,), jnp.float32),
            "o_w": _normal(next(keys), (I, H), dtype=wdt),
            "o_b": jnp.zeros((H,), jnp.float32),
            "ln2_g": jnp.ones((H,), jnp.float32), "ln2_b": jnp.zeros((H,), jnp.float32),
        }
        params["layers"].append(layer)
    return params


# ----------------------------- Forward pass ---------------------------------

def bert_classifier_forward(params, input_ids, attention_mask, cfg):
    B, S = input_ids.shape
    H, nh = cfg["hidden"], cfg["heads"]
    dh = H // nh

    # Embeddings (gathers in JAX glue; eval mode -> no dropout).
    # TODO(synk): token_type_ids assumed all-zero (matches default usage).
    word = params["word_emb"][input_ids]                 # (B, S, H) fp32
    pos = params["pos_emb"][:S]                          # (S, H)
    typ = params["type_emb"][0][None, :]                 # (1, H)
    # Fused word+pos+type add + LayerNorm -> bf16 residual stream.
    x = embed_layernorm(word, pos, typ,
                        params["emb_ln_g"], params["emb_ln_b"])
    x = x.reshape(B * S, H)                              # (B*S, H) bf16

    # Additive attention mask (fp32), one row per batch: (B, 1, S).
    add_mask = ((1.0 - attention_mask.astype(jnp.float32)) * -1e9).reshape(B, 1, S)
    scale = 1.0 / math.sqrt(dh)

    for layer in params["layers"]:
        # Fused QKV projection: one matmul reading x once.
        qkv = linear(x, layer["qkv_w"], layer["qkv_b"])                  # (B*S, 3H) bf16
        ctx = attention(qkv.reshape(B, S, 3 * H), add_mask, nh, dh, scale)  # (B, S, H) bf16
        # Attention output projection + residual + LN fused.
        x = linear_residual_layernorm(ctx.reshape(B * S, H),
                                      layer["ao_w"], layer["ao_b"],
                                      x, layer["ln1_g"], layer["ln1_b"])
        # FFN: bias+gelu fused in the first matmul; bias+residual+LN in the second.
        inter = linear(x, layer["i_w"], layer["i_b"], activation="gelu")
        x = linear_residual_layernorm(inter, layer["o_w"], layer["o_b"],
                                      x, layer["ln2_g"], layer["ln2_b"])

    hidden = x.reshape(B, S, H)
    cls_tok = hidden[:, 0, :]                                            # (B, H) bf16
    # Fused pooler (tanh) + classifier head, single tiny kernel.
    logits = pooler_classifier(cls_tok, params["pool_w"], params["pool_b"],
                               params["cls_w"], params["cls_b"])         # (B, classes)
    return logits


# ----------------------------- Main ------------------------------------------

if __name__ == "__main__":
    cfg = dict(vocab=100, hidden=32, intermediate=64, heads=2, layers=2,
               max_pos=16, type_vocab=2, classes=3)
    B, S = 2, 8

    key = jax.random.PRNGKey(0)
    k_param, k_ids = jax.random.split(key)
    params = init_params(k_param, cfg)

    input_ids = jax.random.randint(k_ids, (B, S), 0, cfg["vocab"], dtype=jnp.int32)
    attention_mask = jnp.array([[1, 1, 1, 1, 1, 1, 1, 1],
                                [1, 1, 1, 1, 1, 0, 0, 0]], dtype=jnp.int32)

    logits = bert_classifier_forward(params, input_ids, attention_mask, cfg)
    jax.block_until_ready(logits)
    assert logits.shape == (B, cfg["classes"])
    assert bool(jnp.all(jnp.isfinite(logits)))
    print("KERNEL_OK")
</pallas_src>

<mosaic_0001>
module attributes {stable_mosaic.version = 11 : i64} {
  func.func @_embed_ln_kernel(%arg0: i32, %arg1: memref<1x8x32xf32, #tpu.memory_space<vmem>>, %arg2: memref<8x32xf32, #tpu.memory_space<vmem>>, %arg3: memref<1x32xf32, #tpu.memory_space<vmem>>, %arg4: memref<1x32xf32, #tpu.memory_space<vmem>>, %arg5: memref<1x32xf32, #tpu.memory_space<vmem>>, %arg6: memref<1x8x32xbf16, #tpu.memory_space<vmem>>) attributes {dimension_semantics = [#tpu.dimension_semantics<parallel>], iteration_bounds = array<i64: 2>, scalar_prefetch = 0 : i64, scratch_operands = 0 : i64, tpu.core_type = #tpu.core_type<tc>, window_params = [{transform_indices = @transform_0, window_bounds = array<i64: 1, 8, 32>}, {pipeline_mode = #tpu.pipeline_mode<synchronous>, transform_indices = @transform_1, window_bounds = array<i64: 8, 32>}, {pipeline_mode = #tpu.pipeline_mode<synchronous>, transform_indices = @transform_2, window_bounds = array<i64: 1, 32>}, {pipeline_mode = #tpu.pipeline_mode<synchronous>, transform_indices = @transform_3, window_bounds = array<i64: 1, 32>}, {pipeline_mode = #tpu.pipeline_mode<synchronous>, transform_indices = @transform_4, window_bounds = array<i64: 1, 32>}, {transform_indices = @transform_5, window_bounds = array<i64: 1, 8, 32>}]} {
    %c0 = arith.constant 0 : index
    %c0_0 = arith.constant 0 : index
    %c0_1 = arith.constant 0 : index
    %0 = vector.load %arg1[%c0, %c0_0, %c0_1] : memref<1x8x32xf32, #tpu.memory_space<vmem>>, vector<1x8x32xf32>
    %1 = vector.shape_cast %0 : vector<1x8x32xf32> to vector<8x32xf32>
    %c0_2 = arith.constant 0 : index
    %c0_3 = arith.constant 0 : index
    %2 = vector.load %arg2[%c0_2, %c0_3] : memref<8x32xf32, #tpu.memory_space<vmem>>, vector<8x32xf32>
    %3 = arith.addf %1, %2 : vector<8x32xf32>
    %c0_4 = arith.constant 0 : index
    %c0_5 = arith.constant 0 : index
    %4 = vector.load %arg3[%c0_4, %c0_5] : memref<1x32xf32, #tpu.memory_space<vmem>>, vector<1x32xf32>
    %5 = vector.broadcast %4 : vector<1x32xf32> to vector<8x32xf32>
    %6 = arith.addf %3, %5 : vector<8x32xf32>
    %cst = arith.constant dense<0.000000e+00> : vector<8xf32>
    %7 = vector.multi_reduction <add>, %6, %cst [1] : vector<8x32xf32> to vector<8xf32>
    %8 = vector.shape_cast %7 : vector<8xf32> to vector<8x1xf32>
    %cst_6 = arith.constant 3.200000e+01 : f32
    %9 = vector.broadcast %cst_6 : f32 to vector<8x1xf32>
    %10 = arith.divf %8, %9 : vector<8x1xf32>
    %11 = vector.broadcast %10 : vector<8x1xf32> to vector<8x32xf32>
    %12 = arith.subf %6, %11 : vector<8x32xf32>
    %13 = arith.mulf %12, %12 : vector<8x32xf32>
    %cst_7 = arith.constant dense<0.000000e+00> : vector<8xf32>
    %14 = vector.multi_reduction <add>, %13, %cst_7 [1] : vector<8x32xf32> to vector<8xf32>
    %15 = vector.shape_cast %14 : vector<8xf32> to vector<8x1xf32>
    %cst_8 = arith.constant 3.200000e+01 : f32
    %16 = vector.broadcast %cst_8 : f32 to vector<8x1xf32>
    %17 = arith.divf %15, %16 : vector<8x1xf32>
    %18 = vector.broadcast %10 : vector<8x1xf32> to vector<8x32xf32>
    %19 = arith.subf %6, %18 : vector<8x32xf32>
    %cst_9 = arith.constant 9.99999996E-13 : f32
    %20 = vector.broadcast %cst_9 : f32 to vector<8x1xf32>
    %21 = arith.addf %17, %20 : vector<8x1xf32>
    %22 = math.rsqrt %21 : vector<8x1xf32>
    %23 = vector.broadcast %22 : vector<8x1xf32> to vector<8x32xf32>
    %24 = arith.mulf %19, %23 : vector<8x32xf32>
    %c0_10 = arith.constant 0 : index
    %c0_11 = arith.constant 0 : index
    %25 = vector.load %arg4[%c0_10, %c0_11] : memref<1x32xf32, #tpu.memory_space<vmem>>, vector<1x32xf32>
    %26 = vector.broadcast %25 : vector<1x32xf32> to vector<8x32xf32>
    %27 = arith.mulf %24, %26 : vector<8x32xf32>
    %c0_12 = arith.constant 0 : index
    %c0_13 = arith.constant 0 : index
    %28 = vector.load %arg5[%c0_12, %c0_13] : memref<1x32xf32, #tpu.memory_space<vmem>>, vector<1x32xf32>
    %29 = vector.broadcast %28 : vector<1x32xf32> to vector<8x32xf32>
    %30 = arith.addf %27, %29 : vector<8x32xf32>
    %31 = arith.truncf %30 : vector<8x32xf32> to vector<8x32xbf16>
    %c0_14 = arith.constant 0 : index
    %c0_15 = arith.constant 0 : index
    %c0_16 = arith.constant 0 : index
    %32 = vector.load %arg6[%c0_14, %c0_15, %c0_16] : memref<1x8x32xbf16, #tpu.memory_space<vmem>>, vector<1x8x32xbf16>
    %33 = vector.shape_cast %32 : vector<1x8x32xbf16> to vector<8x32xbf16>
    %34 = vector.shape_cast %31 : vector<8x32xbf16> to vector<1x8x32xbf16>
    tpu.vector_store %arg6[%c0_14, %c0_15, %c0_16], %34 {strides = array<i32>} : memref<1x8x32xbf16, #tpu.memory_space<vmem>>, vector<1x8x32xbf16>,
    return
  }
  func.func @transform_0(%arg0: i32) -> (i32, i32, i32) {
    %c0_i32 = arith.constant 0 : i32
    %c0_i32_0 = arith.constant 0 : i32
    %c0_i32_1 = arith.constant 0 : i32
    return %arg0, %c0_i32, %c0_i32_0 : i32, i32, i32
  }
  func.func @transform_1(%arg0: i32) -> (i32, i32) {
    %c0_i32 = arith.constant 0 : i32
    %c0_i32_0 = arith.constant 0 : i32
    %c0_i32_1 = arith.constant 0 : i32
    return %c0_i32, %c0_i32_0 : i32, i32
  }
  func.func @transform_2(%arg0: i32) -> (i32, i32) {
    %c0_i32 = arith.constant 0 : i32
    %c0_i32_0 = arith.constant 0 : i32
    %c0_i32_1 = arith.constant 0 : i32
    return %c0_i32, %c0_i32_0 : i32, i32
  }
  func.func @transform_3(%arg0: i32) -> (i32, i32) {
    %c0_i32 = arith.constant 0 : i32
    %c0_i32_0 = arith.constant 0 : i32
    %c0_i32_1 = arith.constant 0 : i32
    return %c0_i32, %c0_i32_0 : i32, i32
  }
  func.func @transform_4(%arg0: i32) -> (i32, i32) {
    %c0_i32 = arith.constant 0 : i32
    %c0_i32_0 = arith.constant 0 : i32
    %c0_i32_1 = arith.constant 0 : i32
    return %c0_i32, %c0_i32_0 : i32, i32
  }
  func.func @transform_5(%arg0: i32) -> (i32, i32, i32) {
    %c0_i32 = arith.constant 0 : i32
    %c0_i32_0 = arith.constant 0 : i32
    %c0_i32_1 = arith.constant 0 : i32
    return %arg0, %c0_i32, %c0_i32_0 : i32, i32, i32
  }
}

</mosaic_0001>

<llo_original>
// kernel: tpu_custom_call.1
$region0: #{tpu_custom_call.1}
  #allocation0 [shape = 'u32[]', space=smem, size = 0x4, offset = 0x4, fixed_abs, tag = 'smem constant byte address 0x4 - core index']
  #allocation1 [shape = 'u32[144,128]{1,0:T(1,128)}', space=vmem, size = 0x12000, scoped, tag = 'internal scratch']
  %s0 = inlined_call_operand.hbm [shape: f32[2,8,32], index: 0, kind: input, shape index: {}]
  %s1 = inlined_call_operand.hbm [shape: f32[8,32], index: 1, kind: input, shape index: {}]
  %s2 = inlined_call_operand.hbm [shape: f32[1,32], index: 2, kind: input, shape index: {}]
  %s3 = inlined_call_operand.hbm [shape: f32[1,32], index: 3, kind: input, shape index: {}]
  %s4 = inlined_call_operand.hbm [shape: f32[1,32], index: 4, kind: input, shape index: {}]
  %s5 = inlined_call_operand.hbm [shape: bf16[2,8,32], index: 5, kind: output, shape index: {}]
  %s6 = sld [smem:[#allocation0]]
  $region73: #{tpu_custom_call.1} parent=0
    _
  %s8 = ssub.s32 1, %s6
  %s9 = scalar_select 0, %s8, %s6
  $region1: #{tpu_custom_call.1} parent=0
    #allocation2 [shape = 'u8[8192]{0}', space=vmem, size = 0x2000, scoped, tag = 'input window, operand 0']
    #allocation3 [shape = 's32[2]{0}', space=sflag, size = 0x8, scoped, tag = 'scoped memory for tpu_custom_call.1']
    #allocation4 [shape = 's32[2]{0}', space=sflag, size = 0x8, scoped, tag = 'scoped memory for tpu_custom_call.1']
    #allocation5 [shape = 'u8[4096]{0}', space=vmem, size = 0x1000, scoped, tag = 'input window, operand 1, single buffered']
    #allocation6 [shape = 's32[1]{0}', space=sflag, size = 0x4, scoped, tag = 'scoped memory for tpu_custom_call.1']
    #allocation7 [shape = 'u8[512]{0}', space=vmem, size = 0x400, scoped, tag = 'input window, operand 2, single buffered']
    #allocation8 [shape = 'u8[512]{0}', space=vmem, size = 0x400, scoped, tag = 'input window, operand 3, single buffered']
    #allocation9 [shape = 's32[1]{0}', space=sflag, size = 0x4, scoped, tag = 'scoped memory for tpu_custom_call.1']
    #allocation10 [shape = 'u8[512]{0}', space=vmem, size = 0x400, scoped, tag = 'input window, operand 4, single buffered']
    #allocation11 [shape = 'u8[4096]{0}', space=vmem, size = 0x1000, scoped, tag = 'output window, operand 0']
    %10 = vsyncpa [#allocation3], 0
    %s11 = scalar_lea.sflag [#allocation3], 1
    %12 = vsyncpa %s11, 0
    %13 = vsyncpa [#allocation6], 0
    %14 = vsyncpa [#allocation9], 0
    %15 = vsyncpa [#allocation4], 0
    %s16 = scalar_lea.sflag [#allocation4], 1
    %17 = vsyncpa %s16, 0
    loop: start=0, step=1, limit=4
    $region2: #{tpu_custom_call.1} parent=1 // loop_pre_header
      _
    $region3: #{tpu_custom_call.1} parent=1 // loop_header
      %s19 = sphi 0, %s23
      %p20 = scmp.ge.s32.totalorder %s19, 4
      %s29 = sphi 0, %s31
      %s32 = sphi 0, %s29
      %s33 = sphi 0, %s32
      %s49 = sphi 0, %s33
      %s53 = sphi 0, %s53
      %s55 = sphi 0, %s53
      %s56 = sphi 0, %s55
      %s70 = sphi 0, %s56
      %s74 = sphi 0, %s74
      %s76 = sphi 0, %s74
      %s77 = sphi 0, %s76
      %s91 = sphi 0, %s77
      %s95 = sphi 0, %s95
      %s97 = sphi 0, %s95
      %s98 = sphi 0, %s97
      %s112 = sphi 0, %s98
      %s116 = sphi 0, %s116
      %s118 = sphi 0, %s116
      %s119 = sphi 0, %s118
      %s133 = sphi 0, %s119
      %s139 = sphi 0, %s141
      %s142 = sphi 0, %s139
      %s143 = sphi 0, %s142
      %s159 = sphi 0, %s143
    $region4: #{tpu_custom_call.1} parent=1 // loop_header_branch
      %22 = sbr.rel (%p20) target = $region8
    $region5: #{tpu_custom_call.1} parent=1 // loop_body
      %s24 = ssub.s32 %s19, 1
      %s25 = ssub.s32 %s19, 2
      %s26 = sadd.s32 %s19, 1
      %s27 = ssub.s32 %s19, %s26
      %p28 = scmp.eq.s32.totalorder %s27, 0
      %s30 = sadd.s32 %s29, 1
      %s31 = scalar_select %p28, %s29, %s30
      %p34 = pneg %p28
      %p35 = scmp.eq.s32.totalorder %s19, 1
      %p36 = por %p34, %p35
      %p37 = scmp.ne.s32.totalorder %s29, %s32
      %p38 = scmp.eq.s32.totalorder %s19, 0
      %p39 = por %p37, %p38
      %p40 = scmp.ne.s32.totalorder %s29, %s32
      %p41 = scmp.eq.s32.totalorder %s24, 1
      %p42 = por %p40, %p41
      %p43 = scmp.ne.s32.totalorder %s32, %s33
      %p44 = scmp.eq.s32.totalorder %s24, 0
      %p45 = por %p43, %p44
      %p46 = scmp.ne.s32.totalorder %s32, %s33
      %p47 = scmp.eq.s32.totalorder %s25, 1
      %p48 = por %p46, %p47
      %p50 = scmp.ne.s32.totalorder %s33, %s49
      %p51 = scmp.eq.s32.totalorder %s25, 0
      %p52 = por %p50, %p51
      %s54 = sadd.s32 %s53, 1
      %p57 = scmp.eq.s32.totalorder %s19, 1
      %p58 = scmp.ne.s32.totalorder %s53, %s55
      %p59 = scmp.eq.s32.totalorder %s19, 0
      %p60 = por %p58, %p59
      %p61 = scmp.ne.s32.totalorder %s53, %s55
      %p62 = scmp.eq.s32.totalorder %s24, 1
      %p63 = por %p61, %p62
      %p64 = scmp.ne.s32.totalorder %s55, %s56
      %p65 = scmp.eq.s32.totalorder %s24, 0
      %p66 = por %p64, %p65
      %p67 = scmp.ne.s32.totalorder %s55, %s56
      %p68 = scmp.eq.s32.totalorder %s25, 1
      %p69 = por %p67, %p68
      %p71 = scmp.ne.s32.totalorder %s56, %s70
      %p72 = scmp.eq.s32.totalorder %s25, 0
      %p73 = por %p71, %p72
      %s75 = sadd.s32 %s74, 1
      %p78 = scmp.eq.s32.totalorder %s19, 1
      %p79 = scmp.ne.s32.totalorder %s74, %s76
      %p80 = scmp.eq.s32.totalorder %s19, 0
      %p81 = por %p79, %p80
      %p82 = scmp.ne.s32.totalorder %s74, %s76
      %p83 = scmp.eq.s32.totalorder %s24, 1
      %p84 = por %p82, %p83
      %p85 = scmp.ne.s32.totalorder %s76, %s77
      %p86 = scmp.eq.s32.totalorder %s24, 0
      %p87 = por %p85, %p86
      %p88 = scmp.ne.s32.totalorder %s76, %s77
      %p89 = scmp.eq.s32.totalorder %s25, 1
      %p90 = por %p88, %p89
      %p92 = scmp.ne.s32.totalorder %s77, %s91
      %p93 = scmp.eq.s32.totalorder %s25, 0
      %p94 = por %p92, %p93
      %s96 = sadd.s32 %s95, 1
      %p99 = scmp.eq.s32.totalorder %s19, 1
      %p100 = scmp.ne.s32.totalorder %s95, %s97
      %p101 = scmp.eq.s32.totalorder %s19, 0
      %p102 = por %p100, %p101
      %p103 = scmp.ne.s32.totalorder %s95, %s97
      %p104 = scmp.eq.s32.totalorder %s24, 1
      %p105 = por %p103, %p104
      %p106 = scmp.ne.s32.totalorder %s97, %s98
      %p107 = scmp.eq.s32.totalorder %s24, 0
      %p108 = por %p106, %p107
      %p109 = scmp.ne.s32.totalorder %s97, %s98
      %p110 = scmp.eq.s32.totalorder %s25, 1
      %p111 = por %p109, %p110
      %p113 = scmp.ne.s32.totalorder %s98, %s112
      %p114 = scmp.eq.s32.totalorder %s25, 0
      %p115 = por %p113, %p114
      %s117 = sadd.s32 %s116, 1
      %p120 = scmp.eq.s32.totalorder %s19, 1
      %p121 = scmp.ne.s32.totalorder %s116, %s118
      %p122 = scmp.eq.s32.totalorder %s19, 0
      %p123 = por %p121, %p122
      %p124 = scmp.ne.s32.totalorder %s116, %s118
      %p125 = scmp.eq.s32.totalorder %s24, 1
      %p126 = por %p124, %p125
      %p127 = scmp.ne.s32.totalorder %s118, %s119
      %p128 = scmp.eq.s32.totalorder %s24, 0
      %p129 = por %p127, %p128
      %p130 = scmp.ne.s32.totalorder %s118, %s119
      %p131 = scmp.eq.s32.totalorder %s25, 1
      %p132 = por %p130, %p131
      %p134 = scmp.ne.s32.totalorder %s119, %s133
      %p135 = scmp.eq.s32.totalorder %s25, 0
      %p136 = por %p134, %p135
      %s137 = ssub.s32 %s19, %s26
      %p138 = scmp.eq.s32.totalorder %s137, 0
      %s140 = sadd.s32 %s139, 1
      %s141 = scalar_select %p138, %s139, %s140
      %p144 = pneg %p138
      %p145 = scmp.eq.s32.totalorder %s19, 1
      %p146 = por %p144, %p145
      %p147 = scmp.ne.s32.totalorder %s139, %s142
      %p148 = scmp.eq.s32.totalorder %s19, 0
      %p149 = por %p147, %p148
      %p150 = scmp.ne.s32.totalorder %s139, %s142
      %p151 = scmp.eq.s32.totalorder %s24, 1
      %p152 = por %p150, %p151
      %p153 = scmp.ne.s32.totalorder %s142, %s143
      %p154 = scmp.eq.s32.totalorder %s24, 0
      %p155 = por %p153, %p154
      %p156 = scmp.ne.s32.totalorder %s142, %s143
      %p157 = scmp.eq.s32.totalorder %s25, 1
      %p158 = por %p156, %p157
      %p160 = scmp.ne.s32.totalorder %s143, %s159
      %p161 = scmp.eq.s32.totalorder %s25, 0
      %p162 = por %p160, %p161
      %p163 = scmp.le.s32.totalorder 1, %s19
      %p164 = scmp.lt.s32.totalorder %s19, 3
      %p165 = pnand %p163, %p164
      %p166 = pneg %p165
      // Predicated region
      $region9: #{tpu_custom_call.1} parent=5 // pred_check
        _
      $region10: #{tpu_custom_call.1} parent=5 // pred_check_branch
        %168 = sbr.rel (%p165) target = $region12
      $region11: #{tpu_custom_call.1} parent=5 // pred_region
        %s169 = ssub.s32 %s19, 1
        // Predicated region
        $region13: #{tpu_custom_call.1} parent=11 // pred_check
          %p170 = pneg %p66
        $region14: #{tpu_custom_call.1} parent=11 // pred_check_branch
          %172 = sbr.rel (%p170) target = $region16
        $region15: #{tpu_custom_call.1} parent=11 // pred_region
          %s174 = ssub.s32 128, 128
          %175 = vsyncadd [#allocation6], %s174
          %s177 = sshll.u32 [#allocation5], 4
          %s178 = int_to_ptr.vmem [resolvable:$true] %s177
          %180 = dma.hbm_to_vmem [thread:$0]  %s1, 128, %s178, [#allocation6]
        $region16: #{tpu_custom_call.1} parent=11 // pred_fallthru
          _
        // Predicated region
        $region17: #{tpu_custom_call.1} parent=11 // pred_check
          %p181 = pneg %p87
        $region18: #{tpu_custom_call.1} parent=11 // pred_check_branch
          %183 = sbr.rel (%p181) target = $region20
        $region19: #{tpu_custom_call.1} parent=11 // pred_region
          %s185 = ssub.s32 16, 16
          %186 = vsyncadd [#allocation6], %s185
          %s188 = sshll.u32 [#allocation7], 4
          %s189 = int_to_ptr.vmem [resolvable:$true] %s188
          %191 = dma.hbm_to_vmem [thread:$0]  %s2, 16, %s189, [#allocation6]
        $region20: #{tpu_custom_call.1} parent=11 // pred_fallthru
          _
        // Predicated region
        $region21: #{tpu_custom_call.1} parent=11 // pred_check
          %p192 = pneg %p108
        $region22: #{tpu_custom_call.1} parent=11 // pred_check_branch
          %194 = sbr.rel (%p192) target = $region24
        $region23: #{tpu_custom_call.1} parent=11 // pred_region
          %s196 = ssub.s32 16, 16
          %197 = vsyncadd [#allocation9], %s196
          %s199 = sshll.u32 [#allocation8], 4
          %s200 = int_to_ptr.vmem [resolvable:$true] %s199
          %202 = dma.hbm_to_vmem [thread:$0]  %s3, 16, %s200, [#allocation9]
        $region24: #{tpu_custom_call.1} parent=11 // pred_fallthru
          _
        // Predicated region
        $region25: #{tpu_custom_call.1} parent=11 // pred_check
          %p203 = pneg %p129
        $region26: #{tpu_custom_call.1} parent=11 // pred_check_branch
          %205 = sbr.rel (%p203) target = $region28
        $region27: #{tpu_custom_call.1} parent=11 // pred_region
          %s207 = ssub.s32 16, 16
          %208 = vsyncadd [#allocation9], %s207
          %s210 = sshll.u32 [#allocation10], 4
          %s211 = int_to_ptr.vmem [resolvable:$true] %s210
          %213 = dma.hbm_to_vmem [thread:$0]  %s4, 16, %s211, [#allocation9]
        $region28: #{tpu_custom_call.1} parent=11 // pred_fallthru
          _
      $region12: #{tpu_custom_call.1} parent=5 // pred_fallthru
        _
      %p214 = scmp.lt.s32.totalorder %s19, 2
      // Predicated region
      $region29: #{tpu_custom_call.1} parent=5 // pred_check
        %p215 = pneg %p214
      $region30: #{tpu_custom_call.1} parent=5 // pred_check_branch
        %217 = sbr.rel (%p215) target = $region32
      $region31: #{tpu_custom_call.1} parent=5 // pred_region
        // Predicated region
        $region33: #{tpu_custom_call.1} parent=31 // pred_check
          %p218 = pneg %p39
        $region34: #{tpu_custom_call.1} parent=31 // pred_check_branch
          %220 = sbr.rel (%p218) target = $region36
        $region35: #{tpu_custom_call.1} parent=31 // pred_region
          %s221 = sand.u32 %s29, 1
          %s222 = scalar_lea.sflag [#allocation3], %s221
          %s223 = sand.u32 %s29, 1
          %s224 = smul.addr %s223, 8
          %s225 = scalar_lea.vmem [#allocation2], %s224
          %s227 = ssub.s32 128, 128
          %228 = vsyncadd %s222, %s227
          %s229 = smul.addr %s19, 128
          %s230 = scalar_lea.hbm %s0, %s229
          %s232 = sshll.u32 %s225, 4
          %s233 = int_to_ptr.vmem [resolvable:$true] %s232
          %235 = dma.hbm_to_vmem [thread:$0]  %s230, 128, %s233, %s222
        $region36: #{tpu_custom_call.1} parent=31 // pred_fallthru
          _
      $region32: #{tpu_custom_call.1} parent=5 // pred_fallthru
        _
      %p236 = scmp.le.s32.totalorder 1, %s19
      %p237 = scmp.lt.s32.totalorder %s19, 3
      %p238 = pnand %p236, %p237
      %p239 = pneg %p238
      // Predicated region
      $region37: #{tpu_custom_call.1} parent=5 // pred_check
        _
      $region38: #{tpu_custom_call.1} parent=5 // pred_check_branch
        %241 = sbr.rel (%p238) target = $region40
      $region39: #{tpu_custom_call.1} parent=5 // pred_region
        %s242 = ssub.s32 %s19, 1
        %s243 = sand.u32 %s32, 1
        %s244 = scalar_lea.sflag [#allocation3], %s243
        %s245 = sand.u32 %s32, 1
        %s246 = smul.addr %s245, 8
        %s247 = scalar_lea.vmem [#allocation2], %s246
        // Predicated region
        $region41: #{tpu_custom_call.1} parent=39 // pred_check
          %p248 = pneg %p45
        $region42: #{tpu_custom_call.1} parent=39 // pred_check_branch
          %250 = sbr.rel (%p248) target = $region44
        $region43: #{tpu_custom_call.1} parent=39 // pred_region
          %251 = dma.done %s244, 128
        $region44: #{tpu_custom_call.1} parent=39 // pred_fallthru
          _
        // Predicated region
        $region45: #{tpu_custom_call.1} parent=39 // pred_check
          %p252 = pneg %p66
        $region46: #{tpu_custom_call.1} parent=39 // pred_check_branch
          %254 = sbr.rel (%p252) target = $region48
        $region47: #{tpu_custom_call.1} parent=39 // pred_region
          %255 = dma.done [#allocation6], 128
        $region48: #{tpu_custom_call.1} parent=39 // pred_fallthru
          _
        // Predicated region
        $region49: #{tpu_custom_call.1} parent=39 // pred_check
          %p256 = pneg %p87
        $region50: #{tpu_custom_call.1} parent=39 // pred_check_branch
          %258 = sbr.rel (%p256) target = $region52
        $region51: #{tpu_custom_call.1} parent=39 // pred_region
          %259 = dma.done [#allocation6], 16
        $region52: #{tpu_custom_call.1} parent=39 // pred_fallthru
          _
        // Predicated region
        $region53: #{tpu_custom_call.1} parent=39 // pred_check
          %p260 = pneg %p108
        $region54: #{tpu_custom_call.1} parent=39 // pred_check_branch
          %262 = sbr.rel (%p260) target = $region56
        $region55: #{tpu_custom_call.1} parent=39 // pred_region
          %263 = dma.done [#allocation9], 16
        $region56: #{tpu_custom_call.1} parent=39 // pred_fallthru
          _
        // Predicated region
        $region57: #{tpu_custom_call.1} parent=39 // pred_check
          %p264 = pneg %p129
        $region58: #{tpu_custom_call.1} parent=39 // pred_check_branch
          %266 = sbr.rel (%p264) target = $region60
        $region59: #{tpu_custom_call.1} parent=39 // pred_region
          %267 = dma.done [#allocation9], 16
        $region60: #{tpu_custom_call.1} parent=39 // pred_fallthru
          _
        %s268 = sand.u32 %s32, 1
        %s269 = scalar_lea.sflag [#allocation3], %s268
        %s270 = sand.u32 %s32, 1
        %s271 = smul.addr %s270, 8
        %s272 = scalar_lea.vmem [#allocation2], %s271
        %p273 = pneg %p45
        %p274 = pneg %p42
        %p275 = pneg %p66
        %p276 = pneg %p63
        %p277 = pneg %p87
        %p278 = pneg %p84
        %p279 = pneg %p108
        %p280 = pneg %p105
        %p281 = pneg %p129
        %p282 = pneg %p126
        %p283 = pneg %p155
        %p284 = pneg %p152
        %s285 = sand.u32 %s142, 1
        %s286 = scalar_lea.sflag [#allocation4], %s285
        %s287 = sand.u32 %s142, 1
        %s288 = smul.addr %s287, 4
        %s289 = scalar_lea.vmem [#allocation11], %s288
        %v290 = vld [vmem:[%s247] sm:$0xff]
        %v291 = vld [vmem:[#allocation5] sm:$0xff]
        %v292 = vadd.f32 %v290, %v291
        %v293 = vld [vmem:[#allocation7] sm:$0x1]
        %v295 = vlaneseq
        %v296 = vshrl.u32 %v295, 7
        %v297 = vsub.s32 0, %v296
        %v298 = vrot.slane %v293, %v297
        %v300 = vadd.f32 %v292, %v298
        %vm301 = vcmask 261120
        %v302 = vsel %vm301, %v300, 0.0
        %303 = vadd.xlane.f32.xlu0 %v302
        %v304 = vpop.xlane.xlu0 %303
        %v305 = vrcp.pop 32.0
        %v306 = vmul.f32 %v304, %v305
        %v307 = vsub.f32 %v300, %v306
        %v308 = vmul.f32 %v307, %v307
        %v309 = vsel %vm301, %v308, 0.0
        %310 = vadd.xlane.f32.xlu0 %v309
        %v311 = vpop.xlane.xlu0 %310
        %v312 = vmul.f32 %v311, %v305
        %v313 = vadd.f32 %v312, 1e-12
        %v314 = vrsqrt.pop %v313
        %v315 = vmul.f32 %v307, %v314
        %v316 = vld [vmem:[#allocation8] sm:$0x1]
        %v318 = vlaneseq
        %v319 = vshrl.u32 %v318, 7
        %v320 = vsub.s32 0, %v319
        %v321 = vrot.slane %v316, %v320
        %v323 = vmul.f32 %v315, %v321
        %v324 = vld [vmem:[#allocation10] sm:$0x1]
        %v326 = vlaneseq
        %v327 = vshrl.u32 %v326, 7
        %v328 = vsub.s32 0, %v327
        %v329 = vrot.slane %v324, %v328
        %v331 = vadd.f32 %v323, %v329
        %v332 = vpack.c.bf16 %v331, %v331
        %vm333 = vcmask 257024
        %334 = vst.msk [vmem:[%s289] sm:$0xf] %vm333, %v332
        %s335 = sand.u32 %s142, 1
        %s336 = scalar_lea.sflag [#allocation4], %s335
        %s337 = sand.u32 %s142, 1
        %s338 = smul.addr %s337, 4
        %s339 = scalar_lea.vmem [#allocation11], %s338
        // Predicated region
        $region61: #{tpu_custom_call.1} parent=39 // pred_check
          %p340 = pneg %p152
        $region62: #{tpu_custom_call.1} parent=39 // pred_check_branch
          %342 = sbr.rel (%p340) target = $region64
        $region63: #{tpu_custom_call.1} parent=39 // pred_region
          %s344 = ssub.s32 64, 64
          %345 = vsyncadd %s336, %s344
          %s346 = smul.addr %s24, 64
          %s347 = scalar_lea.hbm %s5, %s346
          %s349 = sshll.u32 %s339, 4
          %s350 = int_to_ptr.vmem [resolvable:$true] %s349
          %352 = dma.vmem_to_hbm [thread:$0]  %s350, 64, %s347, %s336
        $region64: #{tpu_custom_call.1} parent=39 // pred_fallthru
          _
      $region40: #{tpu_custom_call.1} parent=5 // pred_fallthru
        _
      %p353 = scmp.le.s32.totalorder 2, %s19
      // Predicated region
      $region65: #{tpu_custom_call.1} parent=5 // pred_check
        %p354 = pneg %p353
      $region66: #{tpu_custom_call.1} parent=5 // pred_check_branch
        %356 = sbr.rel (%p354) target = $region68
      $region67: #{tpu_custom_call.1} parent=5 // pred_region
        %s357 = ssub.s32 %s19, 2
        // Predicated region
        $region69: #{tpu_custom_call.1} parent=67 // pred_check
          %p358 = pneg %p158
        $region70: #{tpu_custom_call.1} parent=67 // pred_check_branch
          %360 = sbr.rel (%p358) target = $region72
        $region71: #{tpu_custom_call.1} parent=67 // pred_region
          %s361 = sand.u32 %s143, 1
          %s362 = scalar_lea.sflag [#allocation4], %s361
          %s363 = sand.u32 %s143, 1
          %s364 = smul.addr %s363, 4
          %s365 = scalar_lea.vmem [#allocation11], %s364
          %366 = dma.done %s362, 64
        $region72: #{tpu_custom_call.1} parent=67 // pred_fallthru
          _
      $region68: #{tpu_custom_call.1} parent=5 // pred_fallthru
        _
    $region6: #{tpu_custom_call.1} parent=1 // loop_footer
      %s23 = sadd.s32 1, %s19
    $region7: #{tpu_custom_call.1} parent=1 // loop_footer_branch
      %18 = sbr.rel target = $region3
    $region8: #{tpu_custom_call.1} parent=1 // loop_exit
      _
    %367 = vsyncpa [#allocation3], 1
    %s368 = scalar_lea.sflag [#allocation3], 1
    %369 = vsyncpa %s368, 1
    %370 = vsyncpa [#allocation6], 1
    %371 = vsyncpa [#allocation9], 1
    %372 = vsyncpa [#allocation4], 1
    %s373 = scalar_lea.sflag [#allocation4], 1
    %374 = vsyncpa %s373, 1

</llo_original>
